<compile_context>
chip_gen: v7x
topology: tpu7x:2x2x1
jax: 0.10.0
libtpu: 0.0.40
codegen_flags: <defaults>
</compile_context>

<pallas_src>
import functools

import jax
import jax.numpy as jnp
from jax.experimental import pallas as pl
from jax.experimental.pallas import tpu as pltpu

LANE = 128
VMEM_LIMIT = 32 * 1024 * 1024


def _round_up(x, m):
    return ((x + m - 1) // m) * m


def _pick_divisor_tile(padded_dim, prefs):
    for p in prefs:
        if padded_dim % p == 0:
            return p
    return padded_dim


# ----------------------------------------------------------------------------
# Encoder: patch-conv projection as a tiled Pallas matmul (bf16 -> f32 acc)
# ----------------------------------------------------------------------------
def patch_matmul_kernel(x_ref, w_ref, b_ref, o_ref, acc_ref):
    k = pl.program_id(2)

    @pl.when(k == 0)
    def _():
        acc_ref[...] = jnp.zeros_like(acc_ref)

    acc_ref[...] += jnp.dot(x_ref[...], w_ref[...],
                            preferred_element_type=jnp.float32)

    @pl.when(k == pl.num_programs(2) - 1)
    def _():
        o_ref[...] = (acc_ref[...] + b_ref[...]).astype(o_ref.dtype)


def encode(images, conv_w, conv_b, patch, ep):
    # TODO(synk): pretrained ResNet-50 backbone needs a checkpoint; replaced by a
    # single patch-conv (kernel=stride=patch) projection run on the MXU.
    B, C, H, W = images.shape
    gh, gw = H // patch, W // patch
    x = images.reshape(B, C, gh, patch, gw, patch)
    x = jnp.transpose(x, (0, 2, 4, 1, 3, 5)).reshape(B * gh * gw, C * patch * patch)
    M, K = x.shape
    E = conv_w.shape[1]

    m8 = _round_up(M, 8)
    if m8 >= 256:
        tm, Mp = 256, _round_up(M, 256)
    else:
        tm, Mp = m8, m8
    Kp = _round_up(K, LANE)
    tk = _pick_divisor_tile(Kp, (512, 256, 128))
    tn = _pick_divisor_tile(ep, (256, 128))

    x_p = jnp.pad(x, ((0, Mp - M), (0, Kp - K))).astype(jnp.bfloat16)
    w_p = jnp.pad(conv_w, ((0, Kp - K), (0, ep - E))).astype(jnp.bfloat16)
    b_p = jnp.pad(conv_b, ((0, 0), (0, ep - E)))

    out = pl.pallas_call(
        patch_matmul_kernel,
        out_shape=jax.ShapeDtypeStruct((Mp, ep), jnp.bfloat16),
        grid_spec=pltpu.PrefetchScalarGridSpec(
            num_scalar_prefetch=0,
            grid=(Mp // tm, ep // tn, Kp // tk),
            in_specs=[pl.BlockSpec((tm, tk), lambda i, j, k: (i, k)),
                      pl.BlockSpec((tk, tn), lambda i, j, k: (k, j)),
                      pl.BlockSpec((1, tn), lambda i, j, k: (0, j))],
            out_specs=pl.BlockSpec((tm, tn), lambda i, j, k: (i, j)),
            scratch_shapes=[pltpu.VMEM((tm, tn), jnp.float32)]),
        compiler_params=pltpu.CompilerParams(
            dimension_semantics=("parallel", "parallel", "arbitrary"),
            vmem_limit_bytes=VMEM_LIMIT),
    )(x_p, w_p, b_p)
    return out[:M].reshape(B, gh * gw, ep)        # (B, N, Ep) bf16


# ----------------------------------------------------------------------------
# Decoder: attention + fused LSTMCell + output projection, grid=(batch_blk, T-1)
# ----------------------------------------------------------------------------
def decoder_step_kernel(
        feat_ref, emb_ref,
        u_w_ref, u_b_ref, w_w_ref, w_b_ref, a_w_ref,
        lstm_w_ref, lstm_b_ref,
        inith_w_ref, inith_b_ref, initc_w_ref, initc_b_ref,
        fcn_w_ref, fcn_b_ref,
        preds_ref, alphas_ref,
        uhs_ref, h_ref, c_ref,
        *, dec_dim, n_feat):
    s = pl.program_id(1)
    feat = feat_ref[...]                                   # (BB, Np, Ep) bf16
    BB, Np, Ep = feat.shape
    Ap = u_w_ref.shape[1]
    Dp = dec_dim

    @pl.when(s == 0)
    def _init():
        # Hoisted attention projection: U @ features, computed once per batch block.
        u_hs = jnp.dot(feat.reshape(BB * Np, Ep), u_w_ref[...],
                       preferred_element_type=jnp.float32)
        uhs_ref[...] = u_hs.reshape(BB, Np, Ap) + u_b_ref[...].reshape(1, 1, Ap)
        # init_hidden_state: mean over the real N feature positions (pad rows are 0).
        mean_f = (jnp.sum(feat.astype(jnp.float32), axis=1)
                  * (1.0 / n_feat)).astype(feat.dtype)
        h_ref[...] = (jnp.dot(mean_f, inith_w_ref[...],
                              preferred_element_type=jnp.float32)
                      + inith_b_ref[...])
        c_ref[...] = (jnp.dot(mean_f, initc_w_ref[...],
                              preferred_element_type=jnp.float32)
                      + initc_b_ref[...])

    h = h_ref[...]                                         # (BB, Dp) f32
    c = c_ref[...]                                         # (BB, Dp) f32

    # --- Attention(features, h) ---
    w_ah = (jnp.dot(h.astype(feat.dtype), w_w_ref[...],
                    preferred_element_type=jnp.float32)
            + w_b_ref[...])                                # (BB, Ap)
    combined = jnp.tanh(uhs_ref[...] + w_ah[:, None, :])   # (BB, Np, Ap)
    scores = jnp.sum(combined * a_w_ref[...].reshape(1, 1, Ap), axis=-1)  # (BB, Np)
    # NOTE: A.bias is omitted — softmax is shift-invariant, result is identical.
    valid = jax.lax.broadcasted_iota(jnp.int32, (BB, Np), 1) < n_feat
    scores = jnp.where(valid, scores, -1e30)
    scores = scores - jnp.max(scores, axis=1, keepdims=True)
    exp_s = jnp.where(valid, jnp.exp(scores), 0.0)
    alpha = exp_s * pl.reciprocal(jnp.sum(exp_s, axis=1, keepdims=True),
                                  approx=True)             # (BB, Np)
    # context via MXU batched matvec instead of VPU mul + XLU reduce
    context = jnp.einsum('bqn,bne->bqe',
                         alpha[:, None, :].astype(feat.dtype), feat,
                         preferred_element_type=jnp.float32)[:, 0, :]  # (BB, Ep)

    # --- fused LSTMCell(cat(embed_s, context, h)) : one MXU push ---
    emb_s = emb_ref[0, :, :]                               # (BB, Mp) bf16
    x_cat = jnp.concatenate(
        [emb_s, context.astype(feat.dtype), h.astype(feat.dtype)], axis=1)
    gates = (jnp.dot(x_cat, lstm_w_ref[...],
                     preferred_element_type=jnp.float32)
             + lstm_b_ref[...])                            # (BB, 4*Dp)
    i_g = jax.nn.sigmoid(gates[:, 0 * Dp:1 * Dp])
    f_g = jax.nn.sigmoid(gates[:, 1 * Dp:2 * Dp])
    g_g = jnp.tanh(gates[:, 2 * Dp:3 * Dp])
    o_g = jax.nn.sigmoid(gates[:, 3 * Dp:4 * Dp])
    c_new = f_g * c + i_g * g_g
    h_new = o_g * jnp.tanh(c_new)
    h_ref[...] = h_new
    c_ref[...] = c_new

    # --- output projection (dropout = identity in eval) ---
    out = (jnp.dot(h_new.astype(feat.dtype), fcn_w_ref[...],
                   preferred_element_type=jnp.float32)
           + fcn_b_ref[...])                               # (BB, Vp)
    preds_ref[0, :, :] = out
    alphas_ref[0, :, :] = alpha


def run_decoder(features, embeds_seq, params, *, n_feat, dec_dim_p, vocab_p):
    Tm1, B, Mp = embeds_seq.shape
    _, Np, Ep = features.shape
    Ap = params["u_w"].shape[1]
    Dp, Vp = dec_dim_p, vocab_p
    BB = B                       # one batch block here; use B//n_cores on v7x megacore
    n_bblk = B // BB

    def const_spec(shape):
        n = len(shape)
        return pl.BlockSpec(shape, lambda b, s, _n=n: (0,) * _n)

    in_specs = [
        pl.BlockSpec((BB, Np, Ep), lambda b, s: (b, 0, 0)),      # features (resident)
        pl.BlockSpec((1, BB, Mp), lambda b, s: (s, b, 0)),       # embeds[:, s]
        const_spec((Ep, Ap)), const_spec((1, Ap)),               # attention U
        const_spec((Dp, Ap)), const_spec((1, Ap)),               # attention W
        const_spec((1, Ap)),                                     # attention A weight
        const_spec((Mp + Ep + Dp, 4 * Dp)), const_spec((1, 4 * Dp)),  # fused LSTM
        const_spec((Ep, Dp)), const_spec((1, Dp)),               # init_h
        const_spec((Ep, Dp)), const_spec((1, Dp)),               # init_c
        const_spec((Dp, Vp)), const_spec((1, Vp)),               # fcn
    ]
    out_specs = [
        pl.BlockSpec((1, BB, Vp), lambda b, s: (s, b, 0)),
        pl.BlockSpec((1, BB, Np), lambda b, s: (s, b, 0)),
    ]
    grid_spec = pltpu.PrefetchScalarGridSpec(
        num_scalar_prefetch=0,
        grid=(n_bblk, Tm1),
        in_specs=in_specs,
        out_specs=out_specs,
        scratch_shapes=[pltpu.VMEM((BB, Np, Ap), jnp.float32),   # hoisted U@features
                        pltpu.VMEM((BB, Dp), jnp.float32),       # h
                        pltpu.VMEM((BB, Dp), jnp.float32)],      # c
    )
    preds_t, alphas_t = pl.pallas_call(
        functools.partial(decoder_step_kernel, dec_dim=Dp, n_feat=n_feat),
        grid_spec=grid_spec,
        out_shape=(jax.ShapeDtypeStruct((Tm1, B, Vp), jnp.float32),
                   jax.ShapeDtypeStruct((Tm1, B, Np), jnp.float32)),
        compiler_params=pltpu.CompilerParams(
            dimension_semantics=("parallel", "arbitrary"),
            vmem_limit_bytes=VMEM_LIMIT),
    )(features, embeds_seq,
      params["u_w"], params["u_b"], params["w_w"], params["w_b"], params["a_w"],
      params["lstm_w"], params["lstm_b"],
      params["inith_w"], params["inith_b"], params["initc_w"], params["initc_b"],
      params["fcn_w"], params["fcn_b"])
    return preds_t, alphas_t


# ----------------------------------------------------------------------------
# Parameter construction (natural PyTorch shapes) + wrapper-side padding/fusion
# ----------------------------------------------------------------------------
def init_params(key, *, embed_size, vocab_size, attention_dim, encoder_dim,
                decoder_dim, in_ch, patch):
    ks = jax.random.split(key, 24)
    w = lambda k, shape, s=0.1: s * jax.random.normal(k, shape, dtype=jnp.float32)
    E, A, D, V, M = encoder_dim, attention_dim, decoder_dim, vocab_size, embed_size
    return {
        # encoder (patch-conv stand-in for ResNet-50)
        "conv_w": w(ks[0], (in_ch * patch * patch, E)),
        "conv_b": w(ks[1], (1, E)),
        # decoder embedding
        "emb_table": w(ks[2], (V, M)),
        # attention: U(enc->attn), W(dec->attn), A(attn->1)
        "u_w": w(ks[3], (E, A)), "u_b": w(ks[4], (1, A)),
        "w_w": w(ks[5], (D, A)), "w_b": w(ks[6], (1, A)),
        "a_w": w(ks[7], (1, A)), "a_b": w(ks[8], (1, 1)),
        # LSTMCell(embed+enc -> dec), gate order [i, f, g, o]
        "ih_w": w(ks[9], (M + E, 4 * D)), "ih_b": w(ks[10], (1, 4 * D)),
        "hh_w": w(ks[11], (D, 4 * D)), "hh_b": w(ks[12], (1, 4 * D)),
        # init_h / init_c (enc -> dec)
        "inith_w": w(ks[13], (E, D)), "inith_b": w(ks[14], (1, D)),
        "initc_w": w(ks[15], (E, D)), "initc_b": w(ks[16], (1, D)),
        # fcn (dec -> vocab)
        "fcn_w": w(ks[17], (D, V)), "fcn_b": w(ks[18], (1, V)),
    }


def prepare_params(p, dims):
    """Pad all lane dims to 128-multiples, cast matmul weights to bf16, fuse LSTM."""
    M, E, A = dims["embed"], dims["enc"], dims["attn"]
    D, V = dims["dec"], dims["vocab"]
    Mp, Ep, Ap, Dp, Vp = (_round_up(x, LANE) for x in (M, E, A, D, V))
    bf16 = jnp.bfloat16

    def pad2(a, r, c):
        return jnp.pad(a, ((0, r - a.shape[0]), (0, c - a.shape[1])))

    def pad_gates(w_, r_to):       # (rows, 4*D) -> (r_to, 4*Dp), per-gate column pad
        rows = w_.shape[0]
        w4 = w_.reshape(rows, 4, D)
        w4 = jnp.pad(w4, ((0, r_to - rows), (0, 0), (0, Dp - D)))
        return w4.reshape(r_to, 4 * Dp)

    ih_emb, ih_enc = p["ih_w"][:M], p["ih_w"][M:]
    # fused LSTM weight: rows ordered [embed | context | h] to match kernel concat
    lstm_w = jnp.concatenate(
        [pad_gates(ih_emb, Mp), pad_gates(ih_enc, Ep), pad_gates(p["hh_w"], Dp)],
        axis=0).astype(bf16)
    lstm_b = pad_gates(p["ih_b"] + p["hh_b"], 1)           # f32 (1, 4*Dp)

    # NOTE: p["a_b"] is intentionally unused — softmax is shift-invariant.
    out = {
        "conv_w": p["conv_w"], "conv_b": p["conv_b"],      # padded inside encode()
        "emb_table": pad2(p["emb_table"], V, Mp).astype(bf16),
        "u_w": pad2(p["u_w"], Ep, Ap).astype(bf16), "u_b": pad2(p["u_b"], 1, Ap),
        "w_w": pad2(p["w_w"], Dp, Ap).astype(bf16), "w_b": pad2(p["w_b"], 1, Ap),
        "a_w": pad2(p["a_w"], 1, Ap),
        "lstm_w": lstm_w, "lstm_b": lstm_b,
        "inith_w": pad2(p["inith_w"], Ep, Dp).astype(bf16),
        "inith_b": pad2(p["inith_b"], 1, Dp),
        "initc_w": pad2(p["initc_w"], Ep, Dp).astype(bf16),
        "initc_b": pad2(p["initc_b"], 1, Dp),
        "fcn_w": pad2(p["fcn_w"], Dp, Vp).astype(bf16),
        "fcn_b": pad2(p["fcn_b"], 1, Vp),
    }
    return out, (Mp, Ep, Ap, Dp, Vp)


def encoder_decoder_forward(images, captions, raw_params, *, patch, dims):
    params, (Mp, Ep, Ap, Dp, Vp) = prepare_params(raw_params, dims)
    feats = encode(images, params["conv_w"], params["conv_b"], patch, Ep)  # (B,N,Ep)
    B, N, _ = feats.shape
    Np = _round_up(N, LANE)
    feats = jnp.pad(feats, ((0, 0), (0, Np - N), (0, 0)))       # zero-pad N positions
    embeds = params["emb_table"][captions]                      # (B, T, Mp) bf16
    T = captions.shape[1]
    embeds_seq = jnp.transpose(embeds[:, :T - 1], (1, 0, 2))    # (T-1, B, Mp)

    preds_t, alphas_t = run_decoder(feats, embeds_seq, params,
                                    n_feat=N, dec_dim_p=Dp, vocab_p=Vp)
    V = dims["vocab"]
    preds = jnp.transpose(preds_t, (1, 0, 2))[:, :, :V]         # (B, T-1, V)
    alphas = jnp.transpose(alphas_t, (1, 0, 2))[:, :, :N]       # (B, T-1, N)
    return preds, alphas


if __name__ == "__main__":
    B, C, H, W = 2, 3, 16, 16
    PATCH = 8
    embed_size, vocab_size = 16, 32
    attention_dim, encoder_dim, decoder_dim = 32, 32, 32
    T = 8  # caption length; seq_length = T - 1

    key = jax.random.PRNGKey(0)
    k_img, k_cap, k_par = jax.random.split(key, 3)
    images = jax.random.normal(k_img, (B, C, H, W), dtype=jnp.float32)
    captions = jax.random.randint(k_cap, (B, T), 0, vocab_size, dtype=jnp.int32)

    raw_params = init_params(
        k_par, embed_size=embed_size, vocab_size=vocab_size,
        attention_dim=attention_dim, encoder_dim=encoder_dim,
        decoder_dim=decoder_dim, in_ch=C, patch=PATCH)

    dims = dict(embed=embed_size, vocab=vocab_size, attn=attention_dim,
                enc=encoder_dim, dec=decoder_dim)
    preds, alphas = encoder_decoder_forward(
        images, captions, raw_params, patch=PATCH, dims=dims)
    jax.block_until_ready((preds, alphas))

    num_features = (H // PATCH) * (W // PATCH)
    assert preds.shape == (B, T - 1, vocab_size), preds.shape
    assert alphas.shape == (B, T - 1, num_features), alphas.shape
    assert bool(jnp.all(jnp.isfinite(preds))) and bool(jnp.all(jnp.isfinite(alphas)))
    # alphas are softmax rows — approx-reciprocal => generous tolerance
    assert bool(jnp.allclose(jnp.sum(alphas, axis=-1), 1.0, atol=1e-2))
    print("KERNEL_OK")
</pallas_src>

<mosaic_0001>
module attributes {stable_mosaic.version = 11 : i64} {
  func.func @patch_matmul_kernel(%arg0: i32, %arg1: i32, %arg2: i32, %arg3: memref<8x256xbf16, #tpu.memory_space<vmem>>, %arg4: memref<256x128xbf16, #tpu.memory_space<vmem>>, %arg5: memref<1x128xf32, #tpu.memory_space<vmem>>, %arg6: memref<8x128xbf16, #tpu.memory_space<vmem>>, %arg7: memref<8x128xf32, #tpu.memory_space<vmem>>) attributes {dimension_semantics = [#tpu.dimension_semantics<parallel>, #tpu.dimension_semantics<parallel>, #tpu.dimension_semantics<arbitrary>], iteration_bounds = array<i64: 1, 1, 1>, scalar_prefetch = 0 : i64, scratch_operands = 1 : i64, tpu.core_type = #tpu.core_type<tc>, window_params = [{transform_indices = @transform_0, window_bounds = array<i64: 8, 256>}, {transform_indices = @transform_1, window_bounds = array<i64: 256, 128>}, {transform_indices = @transform_2, window_bounds = array<i64: 1, 128>}, {transform_indices = @transform_3, window_bounds = array<i64: 8, 128>}]} {
    %c0_i32 = arith.constant 0 : i32
    %0 = arith.cmpi eq, %arg2, %c0_i32 : i32
    %1 = arith.extui %0 : i1 to i32
    %c0_i32_0 = arith.constant 0 : i32
    %2 = arith.cmpi ne, %1, %c0_i32_0 : i32
    scf.if %2 {
      %cst_10 = arith.constant 0.000000e+00 : f32
      %12 = vector.broadcast %cst_10 : f32 to vector<8x128xf32>
      %c0_11 = arith.constant 0 : index
      %c0_12 = arith.constant 0 : index
      %13 = vector.load %arg7[%c0_11, %c0_12] : memref<8x128xf32, #tpu.memory_space<vmem>>, vector<8x128xf32>
      tpu.vector_store %arg7[%c0_11, %c0_12], %12 {strides = array<i32>} : memref<8x128xf32, #tpu.memory_space<vmem>>, vector<8x128xf32>,
    } else {
    }
    %c0 = arith.constant 0 : index
    %c0_1 = arith.constant 0 : index
    %3 = vector.load %arg7[%c0, %c0_1] : memref<8x128xf32, #tpu.memory_space<vmem>>, vector<8x128xf32>
    %c0_2 = arith.constant 0 : index
    %c0_3 = arith.constant 0 : index
    %4 = vector.load %arg3[%c0_2, %c0_3] : memref<8x256xbf16, #tpu.memory_space<vmem>>, vector<8x256xbf16>
    %c0_4 = arith.constant 0 : index
    %c0_5 = arith.constant 0 : index
    %5 = vector.load %arg4[%c0_4, %c0_5] : memref<256x128xbf16, #tpu.memory_space<vmem>>, vector<256x128xbf16>
    %cst = arith.constant dense<0.000000e+00> : vector<8x128xf32>
    %6 = tpu.matmul %4, %5, %cst {dimension_numbers = #tpu.dot_dimension_numbers<[1], [0], [0], [1], [0, 0, 1, 1], [], []>} : vector<8x256xbf16>, vector<256x128xbf16>, vector<8x128xf32> -> vector<8x128xf32>
    %7 = arith.addf %3, %6 : vector<8x128xf32>
    %c0_6 = arith.constant 0 : index
    %c0_7 = arith.constant 0 : index
    %8 = vector.load %arg7[%c0_6, %c0_7] : memref<8x128xf32, #tpu.memory_space<vmem>>, vector<8x128xf32>
    tpu.vector_store %arg7[%c0_6, %c0_7], %7 {strides = array<i32>} : memref<8x128xf32, #tpu.memory_space<vmem>>, vector<8x128xf32>,
    %c0_i32_8 = arith.constant 0 : i32
    %9 = arith.cmpi eq, %arg2, %c0_i32_8 : i32
    %10 = arith.extui %9 : i1 to i32
    %c0_i32_9 = arith.constant 0 : i32
    %11 = arith.cmpi ne, %10, %c0_i32_9 : i32
    scf.if %11 {
      %c0_10 = arith.constant 0 : index
      %c0_11 = arith.constant 0 : index
      %12 = vector.load %arg7[%c0_10, %c0_11] : memref<8x128xf32, #tpu.memory_space<vmem>>, vector<8x128xf32>
      %c0_12 = arith.constant 0 : index
      %c0_13 = arith.constant 0 : index
      %13 = vector.load %arg5[%c0_12, %c0_13] : memref<1x128xf32, #tpu.memory_space<vmem>>, vector<1x128xf32>
      %14 = vector.broadcast %13 : vector<1x128xf32> to vector<8x128xf32>
      %15 = arith.addf %12, %14 : vector<8x128xf32>
      %16 = arith.truncf %15 : vector<8x128xf32> to vector<8x128xbf16>
      %c0_14 = arith.constant 0 : index
      %c0_15 = arith.constant 0 : index
      %17 = vector.load %arg6[%c0_14, %c0_15] : memref<8x128xbf16, #tpu.memory_space<vmem>>, vector<8x128xbf16>
      tpu.vector_store %arg6[%c0_14, %c0_15], %16 {strides = array<i32>} : memref<8x128xbf16, #tpu.memory_space<vmem>>, vector<8x128xbf16>,
    } else {
    }
    return
  }
  func.func @transform_0(%arg0: i32, %arg1: i32, %arg2: i32) -> (i32, i32) {
    %c0_i32 = arith.constant 0 : i32
    return %arg0, %arg2 : i32, i32
  }
  func.func @transform_1(%arg0: i32, %arg1: i32, %arg2: i32) -> (i32, i32) {
    %c0_i32 = arith.constant 0 : i32
    return %arg2, %arg1 : i32, i32
  }
  func.func @transform_2(%arg0: i32, %arg1: i32, %arg2: i32) -> (i32, i32) {
    %c0_i32 = arith.constant 0 : i32
    %c0_i32_0 = arith.constant 0 : i32
    return %c0_i32, %arg1 : i32, i32
  }
  func.func @transform_3(%arg0: i32, %arg1: i32, %arg2: i32) -> (i32, i32) {
    %c0_i32 = arith.constant 0 : i32
    return %arg0, %arg1 : i32, i32
  }
}

</mosaic_0001>

<llo_original>
// kernel: tpu_custom_call.1
$region0: #{tpu_custom_call.1}
  #allocation0 [shape = 'u32[]', space=smem, size = 0x4, offset = 0x4, fixed_abs, tag = 'smem constant byte address 0x4 - core index']
  #allocation1 [shape = 'u32[144,128]{1,0:T(1,128)}', space=vmem, size = 0x12000, scoped, tag = 'internal scratch']
  #allocation2 [shape = 'f32[8,128]{1,0:T(8,128)}', space=vmem, size = 0x1000, scoped, tag = 'scratch operand']
  %s0 = inlined_call_operand.hbm [shape: bf16[8,256], index: 0, kind: input, shape index: {}]
  %s1 = inlined_call_operand.hbm [shape: bf16[256,128], index: 1, kind: input, shape index: {}]
  %s2 = inlined_call_operand.vmem [shape: f32[1,128], index: 2, kind: input, shape index: {}]
  %s3 = inlined_call_operand.hbm [shape: bf16[8,128], index: 3, kind: output, shape index: {}]
  %s4 = sld [smem:[#allocation0]]
  $region38: #{tpu_custom_call.1} parent=0
    _
  %s6 = ssub.s32 1, %s4
  %s7 = scalar_select 0, %s6, %s4
  $region1: #{tpu_custom_call.1} parent=0
    #allocation3 [shape = 'u8[4096]{0}', space=vmem, size = 0x1000, scoped, tag = 'input window, operand 0, single buffered']
    #allocation4 [shape = 's32[1]{0}', space=sflag, size = 0x4, scoped, tag = 'scoped memory for tpu_custom_call.1']
    #allocation5 [shape = 's32[1]{0}', space=sflag, size = 0x4, scoped, tag = 'scoped memory for tpu_custom_call.1']
    #allocation6 [shape = 'u8[65536]{0}', space=vmem, size = 0x10000, scoped, tag = 'input window, operand 1, single buffered']
    #allocation7 [shape = 's32[1]{0}', space=sflag, size = 0x4, scoped, tag = 'scoped memory for tpu_custom_call.1']
    #allocation8 [shape = 'u8[2048]{0}', space=vmem, size = 0x800, scoped, tag = 'output window, operand 0, single buffered']
    %8 = vsyncpa [#allocation4], 0
    %9 = vsyncpa [#allocation7], 0
    %10 = vsyncpa [#allocation5], 0
    // Predicated region
    $region2: #{tpu_custom_call.1} parent=1 // pred_check
      _
    $region3: #{tpu_custom_call.1} parent=1 // pred_check_branch
      %12 = sbr.rel (0) target = $region5
    $region4: #{tpu_custom_call.1} parent=1 // pred_region
      %s14 = ssub.s32 128, 128
      %15 = vsyncadd [#allocation4], %s14
      %s17 = sshll.u32 [#allocation3], 4
      %s18 = int_to_ptr.vmem [resolvable:$true] %s17
      %20 = dma.hbm_to_vmem [thread:$0]  %s0, 128, %s18, [#allocation4]
    $region5: #{tpu_custom_call.1} parent=1 // pred_fallthru
      _
    // Predicated region
    $region6: #{tpu_custom_call.1} parent=1 // pred_check
      _
    $region7: #{tpu_custom_call.1} parent=1 // pred_check_branch
      %22 = sbr.rel (0) target = $region9
    $region8: #{tpu_custom_call.1} parent=1 // pred_region
      %s24 = ssub.s32 2048, 2048
      %25 = vsyncadd [#allocation7], %s24
      %s26 = sshll.u32 [#allocation6], 4
      %s27 = int_to_ptr.vmem [resolvable:$true] %s26
      %32 = dma.hbm_to_vmem [thread:$0]  %s1, 2048, %s27, [#allocation7], 64, 64, 4
    $region9: #{tpu_custom_call.1} parent=1 // pred_fallthru
      _
    // Predicated region
    $region10: #{tpu_custom_call.1} parent=1 // pred_check
      _
    $region11: #{tpu_custom_call.1} parent=1 // pred_check_branch
      %34 = sbr.rel (0) target = $region13
    $region12: #{tpu_custom_call.1} parent=1 // pred_region
      _
    $region13: #{tpu_custom_call.1} parent=1 // pred_fallthru
      _
    // Predicated region
    $region14: #{tpu_custom_call.1} parent=1 // pred_check
      _
    $region15: #{tpu_custom_call.1} parent=1 // pred_check_branch
      %36 = sbr.rel (0) target = $region17
    $region16: #{tpu_custom_call.1} parent=1 // pred_region
      %37 = dma.done [#allocation4], 128
    $region17: #{tpu_custom_call.1} parent=1 // pred_fallthru
      _
    // Predicated region
    $region18: #{tpu_custom_call.1} parent=1 // pred_check
      _
    $region19: #{tpu_custom_call.1} parent=1 // pred_check_branch
      %39 = sbr.rel (0) target = $region21
    $region20: #{tpu_custom_call.1} parent=1 // pred_region
      %40 = dma.done [#allocation7], 2048
    $region21: #{tpu_custom_call.1} parent=1 // pred_fallthru
      _
    %p42 = scmp.eq.s32.totalorder 0, 0
    // Predicated region
    $region22: #{tpu_custom_call.1} parent=1 // pred_check
      %p43 = pneg %p42
    $region23: #{tpu_custom_call.1} parent=1 // pred_check_branch
      %45 = sbr.rel (%p43) target = $region25
    $region24: #{tpu_custom_call.1} parent=1 // pred_region
      %46 = vst [vmem:[#allocation2] sm:$0xff] 0.0
    $region25: #{tpu_custom_call.1} parent=1 // pred_fallthru
      _
    %v47 = vld [vmem:[#allocation2] sm:$0xff]
    %v48 = vld [vmem:[#allocation3] sm:$0xff]
    %v49 = vld [vmem:[#allocation6] sm:$0xf]
    %v50 = vld [vmem:[#allocation6 + $0x4] sm:$0xf]
    %v51 = vld [vmem:[#allocation6 + $0x8] sm:$0xf]
    %v52 = vld [vmem:[#allocation6 + $0xc] sm:$0xf]
    %v53 = vld [vmem:[#allocation6 + $0x10] sm:$0xf]
    %v54 = vld [vmem:[#allocation6 + $0x14] sm:$0xf]
    %v55 = vld [vmem:[#allocation6 + $0x18] sm:$0xf]
    %v56 = vld [vmem:[#allocation6 + $0x1c] sm:$0xf]
    %v57 = vld [vmem:[#allocation6 + $0x20] sm:$0xf]
    %v58 = vld [vmem:[#allocation6 + $0x24] sm:$0xf]
    %v59 = vld [vmem:[#allocation6 + $0x28] sm:$0xf]
    %v60 = vld [vmem:[#allocation6 + $0x2c] sm:$0xf]
    %v61 = vld [vmem:[#allocation6 + $0x30] sm:$0xf]
    %v62 = vld [vmem:[#allocation6 + $0x34] sm:$0xf]
    %v63 = vld [vmem:[#allocation6 + $0x38] sm:$0xf]
    %v64 = vld [vmem:[#allocation6 + $0x3c] sm:$0xf]
    %v65 = vld [vmem:[#allocation6 + $0x40] sm:$0xf]
    %v66 = vld [vmem:[#allocation6 + $0x44] sm:$0xf]
    %v67 = vld [vmem:[#allocation6 + $0x48] sm:$0xf]
    %v68 = vld [vmem:[#allocation6 + $0x4c] sm:$0xf]
    %v69 = vld [vmem:[#allocation6 + $0x50] sm:$0xf]
    %v70 = vld [vmem:[#allocation6 + $0x54] sm:$0xf]
    %v71 = vld [vmem:[#allocation6 + $0x58] sm:$0xf]
    %v72 = vld [vmem:[#allocation6 + $0x5c] sm:$0xf]
    %v73 = vld [vmem:[#allocation6 + $0x60] sm:$0xf]
    %v74 = vld [vmem:[#allocation6 + $0x64] sm:$0xf]
    %v75 = vld [vmem:[#allocation6 + $0x68] sm:$0xf]
    %v76 = vld [vmem:[#allocation6 + $0x6c] sm:$0xf]
    %v77 = vld [vmem:[#allocation6 + $0x70] sm:$0xf]
    %v78 = vld [vmem:[#allocation6 + $0x74] sm:$0xf]
    %v79 = vld [vmem:[#allocation6 + $0x78] sm:$0xf]
    %v80 = vld [vmem:[#allocation6 + $0x7c] sm:$0xf]
    %v82 = vunpack.c.l.b16 %v48
    %v83 = vunpack.c.h.b16 %v48
    %v84 = vpack.c.b16 %v82, %v82
    %v85 = vpack.c.b16 %v83, %v83
    %v120 = vunpack.c.l.b16 %v49
    %v121 = vunpack.c.l.b16 %v50
    %v122 = vunpack.c.l.b16 %v51
    %v123 = vunpack.c.l.b16 %v52
    %v124 = vunpack.c.l.b16 %v53
    %v125 = vunpack.c.l.b16 %v54
    %v126 = vunpack.c.l.b16 %v55
    %v127 = vunpack.c.l.b16 %v56
    %v128 = vunpack.c.l.b16 %v57
    %v129 = vunpack.c.l.b16 %v58
    %v130 = vunpack.c.l.b16 %v59
    %v131 = vunpack.c.l.b16 %v60
    %v132 = vunpack.c.l.b16 %v61
    %v133 = vunpack.c.l.b16 %v62
    %v134 = vunpack.c.l.b16 %v63
    %v135 = vunpack.c.l.b16 %v64
    %v136 = vunpack.c.l.b16 %v65
    %v137 = vunpack.c.l.b16 %v66
    %v138 = vunpack.c.l.b16 %v67
    %v139 = vunpack.c.l.b16 %v68
    %v140 = vunpack.c.l.b16 %v69
    %v141 = vunpack.c.l.b16 %v70
    %v142 = vunpack.c.l.b16 %v71
    %v143 = vunpack.c.l.b16 %v72
    %v144 = vunpack.c.l.b16 %v73
    %v145 = vunpack.c.l.b16 %v74
    %v146 = vunpack.c.l.b16 %v75
    %v147 = vunpack.c.l.b16 %v76
    %v148 = vunpack.c.l.b16 %v77
    %v149 = vunpack.c.l.b16 %v78
    %v150 = vunpack.c.l.b16 %v79
    %v151 = vunpack.c.l.b16 %v80
    %v152 = vpack.c.b16 %v121, %v120
    %v153 = vpack.c.b16 %v123, %v122
    %v154 = vpack.c.b16 %v125, %v124
    %v155 = vpack.c.b16 %v127, %v126
    %v156 = vpack.c.b16 %v129, %v128
    %v157 = vpack.c.b16 %v131, %v130
    %v158 = vpack.c.b16 %v133, %v132
    %v159 = vpack.c.b16 %v135, %v134
    %v160 = vpack.c.b16 %v137, %v136
    %v161 = vpack.c.b16 %v139, %v138
    %v162 = vpack.c.b16 %v141, %v140
    %v163 = vpack.c.b16 %v143, %v142
    %v164 = vpack.c.b16 %v145, %v144
    %v165 = vpack.c.b16 %v147, %v146
    %v166 = vpack.c.b16 %v149, %v148
    %v167 = vpack.c.b16 %v151, %v150
    %184 = vmatprep.subr.bf16.mxu0 0
    %185 = vmatpush1.bf16.msra.mxu0 %v152
    %186 = vmatprep.subr.bf16.mxu0 0
    %187 = vmatpush1.bf16.msra.mxu0 %v153
    %188 = vmatprep.subr.bf16.mxu0 0
    %189 = vmatpush1.bf16.msra.mxu0 %v154
    %190 = vmatprep.subr.bf16.mxu0 0
    %191 = vmatpush1.bf16.msra.mxu0 %v155
    %192 = vmatprep.subr.bf16.mxu0 0
    %193 = vmatpush1.bf16.msra.mxu0 %v156
    %194 = vmatprep.subr.bf16.mxu0 0
    %195 = vmatpush1.bf16.msra.mxu0 %v157
    %196 = vmatprep.subr.bf16.mxu0 0
    %197 = vmatpush1.bf16.msra.mxu0 %v158
    %198 = vmatprep.subr.bf16.mxu0 0
    %199 = vmatpush1.bf16.msra.mxu0 %v159
    %200 = vmatprep.subr.bf16.mxu0 0
    %201 = vmatpush1.bf16.msra.mxu0 %v160
    %202 = vmatprep.subr.bf16.mxu0 0
    %203 = vmatpush1.bf16.msra.mxu0 %v161
    %204 = vmatprep.subr.bf16.mxu0 0
    %205 = vmatpush1.bf16.msra.mxu0 %v162
    %206 = vmatprep.subr.bf16.mxu0 0
    %207 = vmatpush1.bf16.msra.mxu0 %v163
    %208 = vmatprep.subr.bf16.mxu0 0
    %209 = vmatpush1.bf16.msra.mxu0 %v164
    %210 = vmatprep.subr.bf16.mxu0 0
    %211 = vmatpush1.bf16.msra.mxu0 %v165
    %212 = vmatprep.subr.bf16.mxu0 0
    %213 = vmatpush1.bf16.msra.mxu0 %v166
    %214 = vmatprep.subr.bf16.mxu0 0
    %215 = vmatpush1.bf16.msra.mxu0 %v167
    %216 = vmatprep.mubr.bf16.mxu0 %v85
    %217 = vmatmul.mubr.bf16.gmra.mrb[0].mxu0 %v84
    %v218 = vpop.f32.mrb[0].mxu0
    %v219 = vadd.f32 0.0, %v218
    %v220 = vpop.f32.mrb[0].mxu0
    %v221 = vpop.f32.mrb[0].mxu0
    %v222 = vpop.f32.mrb[0].mxu0
    %223 = vdwg.mxu0
    %v224 = vadd.f32 %v47, %v219
    %225 = vst [vmem:[#allocation2] sm:$0xff] %v224
    // Predicated region
    $region26: #{tpu_custom_call.1} parent=1 // pred_check
      %p226 = pneg %p42
    $region27: #{tpu_custom_call.1} parent=1 // pred_check_branch
      %228 = sbr.rel (%p226) target = $region29
    $region28: #{tpu_custom_call.1} parent=1 // pred_region
      %v229 = vld [vmem:[#allocation2] sm:$0xff]
      %v230 = vld [vmem:[%s2] sm:$0x1]
      %v232 = vlaneseq
      %v233 = vshrl.u32 %v232, 7
      %v234 = vsub.s32 0, %v233
      %v235 = vrot.slane %v230, %v234
      %v237 = vadd.f32 %v229, %v235
      %v238 = vpack.c.bf16 %v237, %v237
      %239 = vst [vmem:[#allocation8] sm:$0xf] %v238
    $region29: #{tpu_custom_call.1} parent=1 // pred_fallthru
      _
    // Predicated region
    $region30: #{tpu_custom_call.1} parent=1 // pred_check
      _
    $region31: #{tpu_custom_call.1} parent=1 // pred_check_branch
      %241 = sbr.rel (0) target = $region33
    $region32: #{tpu_custom_call.1} parent=1 // pred_region
      %s243 = ssub.s32 64, 64
      %244 = vsyncadd [#allocation5], %s243
      %s246 = sshll.u32 [#allocation8], 4
      %s247 = int_to_ptr.vmem [resolvable:$true] %s246
      %249 = dma.vmem_to_hbm [thread:$0]  %s247, 64, %s3, [#allocation5]
    $region33: #{tpu_custom_call.1} parent=1 // pred_fallthru
      _
    // Predicated region
    $region34: #{tpu_custom_call.1} parent=1 // pred_check
      _
    $region35: #{tpu_custom_call.1} parent=1 // pred_check_branch
      %251 = sbr.rel (0) target = $region37
    $region36: #{tpu_custom_call.1} parent=1 // pred_region
      %252 = dma.done [#allocation5], 64
    $region37: #{tpu_custom_call.1} parent=1 // pred_fallthru
      _
    %253 = vsyncpa [#allocation4], 1
    %254 = vsyncpa [#allocation7], 1
    %255 = vsyncpa [#allocation5], 1

</llo_original>
